<compile_context>
chip_gen: v5e
topology: v5e:2x2
jax: 0.10.0
libtpu: 0.0.40
codegen_flags: <defaults>
</compile_context>

<pallas_src>
import functools
import math

import numpy as np
import jax
import jax.numpy as jnp
from jax.experimental import pallas as pl
from jax.experimental.pallas import tpu as pltpu

BN_EPS = 1e-5
SOFTPLUS_THRESHOLD = 20.0

# Feature sizes of the default AgentNet: layers = [(2, 48), (48, 12), (12, 1)]
IN_F, F1, F2, F3 = 2, 48, 12, 1

LANES = 128
X_PAD = 128                # lane-padded input width
EDGES_PER_GROUP = 2        # G: safe on all chips (K=96<=128, N=24); 5 suits v6e/v7x MXU.

# p1 slab rows: 0,1 = W1 rows; 2 = b1; 3 = gamma1; 4 = beta1  (width 48*G lanes)
# p23 slab rows: 0 = b2; 1 = gamma2; 2 = beta2; 3 = b3; 4 = gamma3; 5 = beta3;
#                rows 8 .. 8+12*G-1 = block-diagonal W3 (12*G, G)


def _round_up(v, m):
    return -(-v // m) * m


def _softplus(v):
    # PyTorch F.softplus(beta=1, threshold=20): identity for v > 20.
    safe = jnp.minimum(v, SOFTPLUS_THRESHOLD)
    return jnp.where(v > SOFTPLUS_THRESHOLD, v, jnp.log1p(jnp.exp(safe)))


def _batchnorm_train(v, gamma, beta):
    # Two-pass (centered) biased batch statistics: matches PyTorch training-mode
    # normalization and avoids E[x^2]-E[x]^2 cancellation in f32.
    inv_n = 1.0 / v.shape[0]
    mean = jnp.sum(v, axis=0, keepdims=True) * inv_n
    c = v - mean
    var = jnp.sum(c * c, axis=0, keepdims=True) * inv_n
    return c * jax.lax.rsqrt(var + BN_EPS) * gamma + beta


def agentnet_kernel(x_ref, p1_ref, w2_ref, p23_ref, out_ref, *, g):
    n1 = F1 * g            # lane width of stage-1 activations
    n2 = F2 * g            # lane width of stage-2 activations

    x = x_ref[...]                       # (B, X_PAD) f32, resident across the grid
    x0 = x[:, 0:1]
    x1 = x[:, 1:2]

    p1 = p1_ref[0]                       # (8, L1)
    w2 = w2_ref[0]                       # (48*g, 128) block-diagonal W2^T
    p23 = p23_ref[0]                     # (P23_ROWS, 128)

    # ---- stage 1: Linear(2,48) for g edges as two broadcast FMAs on the VPU
    h = (x0 * p1[0:1, :n1] + x1 * p1[1:2, :n1] + p1[2:3, :n1])
    h = _softplus(h)
    h = _softplus(_batchnorm_train(h, p1[3:4, :n1], p1[4:5, :n1]))

    # ---- stage 2: block-diagonal Linear(48,12) for g edges in ONE MXU matmul
    h = jnp.dot(h, w2[:, :n2], preferred_element_type=jnp.float32) + p23[0:1, :n2]
    h = _softplus(h)
    h = _softplus(_batchnorm_train(h, p23[1:2, :n2], p23[2:3, :n2]))

    # ---- stage 3: block-diagonal Linear(12,1) -> (B, g)
    w3 = p23[8:8 + n2, :g]
    h = jnp.dot(h, w3, preferred_element_type=jnp.float32) + p23[3:4, :g]
    h = _softplus(h)
    h = _softplus(_batchnorm_train(h, p23[4:5, :g], p23[5:6, :g]))

    out_ref[0] = h                       # lane-packed (B, g) result for this group


@jax.jit
def _agentnet_pallas(x_pad, p1, w2, p23):
    b = x_pad.shape[0]
    ng = p1.shape[0]
    l1 = p1.shape[2]
    g = w2.shape[1] // F1
    n2 = F2 * g
    p23_rows = p23.shape[1]

    # Explicit VMEM budget (double-buffered slabs + resident x + output + temps).
    slab_bytes = (8 * l1 + F1 * g * LANES + p23_rows * LANES) * 4
    est = (x_pad.size * 4 + 4 * slab_bytes + 4 * b * LANES * 4
           + 8 * b * max(l1, LANES) * 4)
    vmem_limit = int(min(48 * 1024 * 1024, max(4 * 1024 * 1024, 2 * est)))

    flops = ng * b * (4 * F1 * g + 2 * F1 * g * n2 + 2 * n2 * g
                      + 10 * (F1 * g + n2 + g))
    transcendentals = ng * b * 4 * (F1 * g + n2 + g)
    bytes_accessed = (x_pad.size + p1.size + w2.size + p23.size + ng * b * g) * 4

    return pl.pallas_call(
        functools.partial(agentnet_kernel, g=g),
        out_shape=jax.ShapeDtypeStruct((ng, b, g), jnp.float32),
        grid=(ng,),
        in_specs=[
            pl.BlockSpec((b, X_PAD), lambda gi: (0, 0)),            # resident
            pl.BlockSpec((1, 8, l1), lambda gi: (gi, 0, 0)),
            pl.BlockSpec((1, F1 * g, LANES), lambda gi: (gi, 0, 0)),
            pl.BlockSpec((1, p23_rows, LANES), lambda gi: (gi, 0, 0)),
        ],
        out_specs=pl.BlockSpec((1, b, g), lambda gi: (gi, 0, 0)),
        compiler_params=pltpu.CompilerParams(
            dimension_semantics=("parallel",),
            vmem_limit_bytes=vmem_limit),
        cost_estimate=pl.CostEstimate(
            flops=int(flops),
            transcendentals=int(transcendentals),
            bytes_accessed=int(bytes_accessed)),
    )(x_pad, p1, w2, p23)


def agentnet_forward(x, packed, dnn_edges):
    """Mirrors AgentNet.forward: returns {edge: (B, 1) action tensor}."""
    p1, w2, p23 = packed
    g = w2.shape[1] // F1
    b = x.shape[0]
    x2d = x.reshape(b, -1).astype(jnp.float32)               # x.reshape(x.size(0), -1)
    x_pad = jnp.pad(x2d, ((0, 0), (0, X_PAD - x2d.shape[1])))  # lane-dense input DMA
    out = _agentnet_pallas(x_pad, p1, w2, p23)                # (num_groups, B, g)
    return {edge: out[i // g, :, i % g:i % g + 1] for i, edge in enumerate(dnn_edges)}


def init_edge_params(key, layers=((IN_F, F1), (F1, F2), (F2, F3))):
    """PyTorch-default-like init: uniform +/- 1/sqrt(fan_in) for Linear,
    gamma=1 / beta=0 for BatchNorm1d."""
    p = {}
    for idx, (fin, fout) in enumerate(layers, start=1):
        key, kw, kb = jax.random.split(key, 3)
        bound = 1.0 / math.sqrt(fin)
        p[f"w{idx}"] = jax.random.uniform(kw, (fout, fin), jnp.float32, -bound, bound)
        p[f"b{idx}"] = jax.random.uniform(kb, (fout,), jnp.float32, -bound, bound)
        p[f"g{idx}"] = jnp.ones((fout,), jnp.float32)
        p[f"be{idx}"] = jnp.zeros((fout,), jnp.float32)
    return p


def pack_params(edge_params, g=EDGES_PER_GROUP):
    """Packs per-edge params into lane-packed per-group slabs (block-diagonal
    W2/W3).  Edges are grouped g at a time; missing slots stay zero (harmless:
    dummy lanes produce finite values and are sliced away)."""
    e_total = len(edge_params)
    ng = _round_up(e_total, g) // g
    l1 = _round_up(F1 * g, LANES)
    n2 = F2 * g
    p23_rows = 8 + _round_up(n2, 8)
    assert n2 <= LANES and g <= LANES, "edges_per_group too large for 128 lanes"

    p1 = np.zeros((ng, 8, l1), np.float32)
    w2 = np.zeros((ng, F1 * g, LANES), np.float32)
    p23 = np.zeros((ng, p23_rows, LANES), np.float32)

    for ei, p in enumerate(edge_params):
        gi, j = divmod(ei, g)
        c1, c2 = j * F1, j * F2
        p1[gi, 0:IN_F, c1:c1 + F1] = np.asarray(p["w1"]).T        # (2, 48)
        p1[gi, 2, c1:c1 + F1] = np.asarray(p["b1"])
        p1[gi, 3, c1:c1 + F1] = np.asarray(p["g1"])
        p1[gi, 4, c1:c1 + F1] = np.asarray(p["be1"])
        w2[gi, c1:c1 + F1, c2:c2 + F2] = np.asarray(p["w2"]).T    # (48, 12) block diag
        p23[gi, 0, c2:c2 + F2] = np.asarray(p["b2"])
        p23[gi, 1, c2:c2 + F2] = np.asarray(p["g2"])
        p23[gi, 2, c2:c2 + F2] = np.asarray(p["be2"])
        p23[gi, 3, j] = np.asarray(p["b3"])[0]
        p23[gi, 4, j] = np.asarray(p["g3"])[0]
        p23[gi, 5, j] = np.asarray(p["be3"])[0]
        p23[gi, 8 + c2:8 + c2 + F2, j] = np.asarray(p["w3"]).reshape(-1)  # (12,)
    return jnp.asarray(p1), jnp.asarray(w2), jnp.asarray(p23)


def _reference_forward(x, edge_params, dnn_edges):
    # Pure-JAX reference with PyTorch-style two-pass BN statistics.
    b = x.shape[0]
    x2d = x.reshape(b, -1).astype(jnp.float32)
    outs = {}
    for edge, p in zip(dnn_edges, edge_params):
        h = x2d
        for i in (1, 2, 3):
            h = _softplus(h @ p[f"w{i}"].T + p[f"b{i}"])
            mean = h.mean(axis=0, keepdims=True)
            var = ((h - mean) ** 2).mean(axis=0, keepdims=True)
            h = _softplus((h - mean) * jax.lax.rsqrt(var + BN_EPS) * p[f"g{i}"]
                          + p[f"be{i}"])
        outs[edge] = h
    return outs


if __name__ == "__main__":
    key = jax.random.PRNGKey(0)
    key, kx = jax.random.split(key)

    B = 8
    # 3 edges -> 2 lane-packed groups of 2 (one dummy slot), exercising padding.
    dnn_edges = ((0, 1), (0, 2), (1, 2))
    # Input consistent with layers[0][0] == 2 after flatten: (B, 2, 1) -> (B, 2)
    x = jax.random.normal(kx, (B, IN_F, 1), dtype=jnp.float32)

    edge_params = []
    for _ in dnn_edges:
        key, kp = jax.random.split(key)
        edge_params.append(init_edge_params(kp))
    packed = pack_params(edge_params)

    outputs = agentnet_forward(x, packed, dnn_edges)
    jax.block_until_ready(outputs[dnn_edges[0]])

    refs = _reference_forward(x, edge_params, dnn_edges)
    for edge in dnn_edges:
        got, want = outputs[edge], refs[edge]
        assert got.shape == (B, F3)
        assert jnp.allclose(got, want, atol=1e-4, rtol=1e-4), \
            f"mismatch vs reference for edge {edge}"

    print("KERNEL_OK")
</pallas_src>

<mosaic_0001>
module attributes {stable_mosaic.version = 11 : i64} {
  func.func @agentnet_kernel(%arg0: i32, %arg1: memref<8x128xf32, #tpu.memory_space<vmem>>, %arg2: memref<1x8x128xf32, #tpu.memory_space<vmem>>, %arg3: memref<1x96x128xf32, #tpu.memory_space<vmem>>, %arg4: memref<1x32x128xf32, #tpu.memory_space<vmem>>, %arg5: memref<1x8x2xf32, #tpu.memory_space<vmem>>) attributes {dimension_semantics = [#tpu.dimension_semantics<parallel>], iteration_bounds = array<i64: 2>, scalar_prefetch = 0 : i64, scratch_operands = 0 : i64, tpu.core_type = #tpu.core_type<tc>, window_params = [{pipeline_mode = #tpu.pipeline_mode<synchronous>, transform_indices = @transform_0, window_bounds = array<i64: 8, 128>}, {transform_indices = @transform_1, window_bounds = array<i64: 1, 8, 128>}, {transform_indices = @transform_2, window_bounds = array<i64: 1, 96, 128>}, {transform_indices = @transform_3, window_bounds = array<i64: 1, 32, 128>}, {transform_indices = @transform_4, window_bounds = array<i64: 1, 8, 2>}]} {
    %c0 = arith.constant 0 : index
    %c0_0 = arith.constant 0 : index
    %0 = vector.load %arg1[%c0, %c0_0] : memref<8x128xf32, #tpu.memory_space<vmem>>, vector<8x128xf32>
    %1 = vector.extract_strided_slice %0 {offsets = [0, 0], sizes = [8, 1], strides = [1, 1]} : vector<8x128xf32> to vector<8x1xf32>
    %2 = vector.extract_strided_slice %0 {offsets = [0, 1], sizes = [8, 1], strides = [1, 1]} : vector<8x128xf32> to vector<8x1xf32>
    %c0_1 = arith.constant 0 : index
    %c0_2 = arith.constant 0 : index
    %c0_3 = arith.constant 0 : index
    %3 = vector.load %arg2[%c0_1, %c0_2, %c0_3] : memref<1x8x128xf32, #tpu.memory_space<vmem>>, vector<1x8x128xf32>
    %4 = vector.shape_cast %3 : vector<1x8x128xf32> to vector<8x128xf32>
    %c0_4 = arith.constant 0 : index
    %c0_5 = arith.constant 0 : index
    %c0_6 = arith.constant 0 : index
    %5 = vector.load %arg3[%c0_4, %c0_5, %c0_6] : memref<1x96x128xf32, #tpu.memory_space<vmem>>, vector<1x96x128xf32>
    %6 = vector.shape_cast %5 : vector<1x96x128xf32> to vector<96x128xf32>
    %c0_7 = arith.constant 0 : index
    %c0_8 = arith.constant 0 : index
    %c0_9 = arith.constant 0 : index
    %7 = vector.load %arg4[%c0_7, %c0_8, %c0_9] : memref<1x32x128xf32, #tpu.memory_space<vmem>>, vector<1x32x128xf32>
    %8 = vector.shape_cast %7 : vector<1x32x128xf32> to vector<32x128xf32>
    %9 = vector.extract_strided_slice %4 {offsets = [0, 0], sizes = [1, 96], strides = [1, 1]} : vector<8x128xf32> to vector<1x96xf32>
    %10 = vector.broadcast %1 : vector<8x1xf32> to vector<8x96xf32>
    %11 = vector.broadcast %9 : vector<1x96xf32> to vector<8x96xf32>
    %12 = arith.mulf %10, %11 : vector<8x96xf32>
    %13 = vector.extract_strided_slice %4 {offsets = [1, 0], sizes = [1, 96], strides = [1, 1]} : vector<8x128xf32> to vector<1x96xf32>
    %14 = vector.broadcast %2 : vector<8x1xf32> to vector<8x96xf32>
    %15 = vector.broadcast %13 : vector<1x96xf32> to vector<8x96xf32>
    %16 = arith.mulf %14, %15 : vector<8x96xf32>
    %17 = arith.addf %12, %16 : vector<8x96xf32>
    %18 = vector.extract_strided_slice %4 {offsets = [2, 0], sizes = [1, 96], strides = [1, 1]} : vector<8x128xf32> to vector<1x96xf32>
    %19 = vector.broadcast %18 : vector<1x96xf32> to vector<8x96xf32>
    %20 = arith.addf %17, %19 : vector<8x96xf32>
    %cst = arith.constant 2.000000e+01 : f32
    %21 = vector.broadcast %cst : f32 to vector<8x96xf32>
    %22 = arith.minimumf %20, %21 : vector<8x96xf32>
    %cst_10 = arith.constant 2.000000e+01 : f32
    %23 = vector.broadcast %cst_10 : f32 to vector<8x96xf32>
    %24 = arith.cmpf ogt, %20, %23 : vector<8x96xf32>
    %25 = math.exp %22 : vector<8x96xf32>
    %26 = math.log1p %25 : vector<8x96xf32>
    %27 = arith.select %24, %20, %26 : vector<8x96xi1>, vector<8x96xf32>
    %28 = vector.extract_strided_slice %4 {offsets = [3, 0], sizes = [1, 96], strides = [1, 1]} : vector<8x128xf32> to vector<1x96xf32>
    %29 = vector.extract_strided_slice %4 {offsets = [4, 0], sizes = [1, 96], strides = [1, 1]} : vector<8x128xf32> to vector<1x96xf32>
    %cst_11 = arith.constant dense<0.000000e+00> : vector<96xf32>
    %30 = vector.multi_reduction <add>, %27, %cst_11 [0] : vector<8x96xf32> to vector<96xf32>
    %31 = vector.shape_cast %30 : vector<96xf32> to vector<1x96xf32>
    %cst_12 = arith.constant 1.250000e-01 : f32
    %32 = vector.broadcast %cst_12 : f32 to vector<1x96xf32>
    %33 = arith.mulf %31, %32 : vector<1x96xf32>
    %34 = vector.broadcast %33 : vector<1x96xf32> to vector<8x96xf32>
    %35 = arith.subf %27, %34 : vector<8x96xf32>
    %36 = arith.mulf %35, %35 : vector<8x96xf32>
    %cst_13 = arith.constant dense<0.000000e+00> : vector<96xf32>
    %37 = vector.multi_reduction <add>, %36, %cst_13 [0] : vector<8x96xf32> to vector<96xf32>
    %38 = vector.shape_cast %37 : vector<96xf32> to vector<1x96xf32>
    %cst_14 = arith.constant 1.250000e-01 : f32
    %39 = vector.broadcast %cst_14 : f32 to vector<1x96xf32>
    %40 = arith.mulf %38, %39 : vector<1x96xf32>
    %cst_15 = arith.constant 9.99999974E-6 : f32
    %41 = vector.broadcast %cst_15 : f32 to vector<1x96xf32>
    %42 = arith.addf %40, %41 : vector<1x96xf32>
    %43 = math.rsqrt %42 : vector<1x96xf32>
    %44 = vector.broadcast %43 : vector<1x96xf32> to vector<8x96xf32>
    %45 = arith.mulf %35, %44 : vector<8x96xf32>
    %46 = vector.broadcast %28 : vector<1x96xf32> to vector<8x96xf32>
    %47 = arith.mulf %45, %46 : vector<8x96xf32>
    %48 = vector.broadcast %29 : vector<1x96xf32> to vector<8x96xf32>
    %49 = arith.addf %47, %48 : vector<8x96xf32>
    %cst_16 = arith.constant 2.000000e+01 : f32
    %50 = vector.broadcast %cst_16 : f32 to vector<8x96xf32>
    %51 = arith.minimumf %49, %50 : vector<8x96xf32>
    %cst_17 = arith.constant 2.000000e+01 : f32
    %52 = vector.broadcast %cst_17 : f32 to vector<8x96xf32>
    %53 = arith.cmpf ogt, %49, %52 : vector<8x96xf32>
    %54 = math.exp %51 : vector<8x96xf32>
    %55 = math.log1p %54 : vector<8x96xf32>
    %56 = arith.select %53, %49, %55 : vector<8x96xi1>, vector<8x96xf32>
    %57 = vector.extract_strided_slice %6 {offsets = [0, 0], sizes = [96, 24], strides = [1, 1]} : vector<96x128xf32> to vector<96x24xf32>
    %cst_18 = arith.constant dense<0.000000e+00> : vector<8x24xf32>
    %58 = tpu.matmul %56, %57, %cst_18 {dimension_numbers = #tpu.dot_dimension_numbers<[1], [0], [0], [1], [0, 0, 1, 1], [], []>} : vector<8x96xf32>, vector<96x24xf32>, vector<8x24xf32> -> vector<8x24xf32>
    %59 = vector.extract_strided_slice %8 {offsets = [0, 0], sizes = [1, 24], strides = [1, 1]} : vector<32x128xf32> to vector<1x24xf32>
    %60 = vector.broadcast %59 : vector<1x24xf32> to vector<8x24xf32>
    %61 = arith.addf %58, %60 : vector<8x24xf32>
    %cst_19 = arith.constant 2.000000e+01 : f32
    %62 = vector.broadcast %cst_19 : f32 to vector<8x24xf32>
    %63 = arith.minimumf %61, %62 : vector<8x24xf32>
    %cst_20 = arith.constant 2.000000e+01 : f32
    %64 = vector.broadcast %cst_20 : f32 to vector<8x24xf32>
    %65 = arith.cmpf ogt, %61, %64 : vector<8x24xf32>
    %66 = math.exp %63 : vector<8x24xf32>
    %67 = math.log1p %66 : vector<8x24xf32>
    %68 = arith.select %65, %61, %67 : vector<8x24xi1>, vector<8x24xf32>
    %69 = vector.extract_strided_slice %8 {offsets = [1, 0], sizes = [1, 24], strides = [1, 1]} : vector<32x128xf32> to vector<1x24xf32>
    %70 = vector.extract_strided_slice %8 {offsets = [2, 0], sizes = [1, 24], strides = [1, 1]} : vector<32x128xf32> to vector<1x24xf32>
    %cst_21 = arith.constant dense<0.000000e+00> : vector<24xf32>
    %71 = vector.multi_reduction <add>, %68, %cst_21 [0] : vector<8x24xf32> to vector<24xf32>
    %72 = vector.shape_cast %71 : vector<24xf32> to vector<1x24xf32>
    %cst_22 = arith.constant 1.250000e-01 : f32
    %73 = vector.broadcast %cst_22 : f32 to vector<1x24xf32>
    %74 = arith.mulf %72, %73 : vector<1x24xf32>
    %75 = vector.broadcast %74 : vector<1x24xf32> to vector<8x24xf32>
    %76 = arith.subf %68, %75 : vector<8x24xf32>
    %77 = arith.mulf %76, %76 : vector<8x24xf32>
    %cst_23 = arith.constant dense<0.000000e+00> : vector<24xf32>
    %78 = vector.multi_reduction <add>, %77, %cst_23 [0] : vector<8x24xf32> to vector<24xf32>
    %79 = vector.shape_cast %78 : vector<24xf32> to vector<1x24xf32>
    %cst_24 = arith.constant 1.250000e-01 : f32
    %80 = vector.broadcast %cst_24 : f32 to vector<1x24xf32>
    %81 = arith.mulf %79, %80 : vector<1x24xf32>
    %cst_25 = arith.constant 9.99999974E-6 : f32
    %82 = vector.broadcast %cst_25 : f32 to vector<1x24xf32>
    %83 = arith.addf %81, %82 : vector<1x24xf32>
    %84 = math.rsqrt %83 : vector<1x24xf32>
    %85 = vector.broadcast %84 : vector<1x24xf32> to vector<8x24xf32>
    %86 = arith.mulf %76, %85 : vector<8x24xf32>
    %87 = vector.broadcast %69 : vector<1x24xf32> to vector<8x24xf32>
    %88 = arith.mulf %86, %87 : vector<8x24xf32>
    %89 = vector.broadcast %70 : vector<1x24xf32> to vector<8x24xf32>
    %90 = arith.addf %88, %89 : vector<8x24xf32>
    %cst_26 = arith.constant 2.000000e+01 : f32
    %91 = vector.broadcast %cst_26 : f32 to vector<8x24xf32>
    %92 = arith.minimumf %90, %91 : vector<8x24xf32>
    %cst_27 = arith.constant 2.000000e+01 : f32
    %93 = vector.broadcast %cst_27 : f32 to vector<8x24xf32>
    %94 = arith.cmpf ogt, %90, %93 : vector<8x24xf32>
    %95 = math.exp %92 : vector<8x24xf32>
    %96 = math.log1p %95 : vector<8x24xf32>
    %97 = arith.select %94, %90, %96 : vector<8x24xi1>, vector<8x24xf32>
    %98 = vector.extract_strided_slice %8 {offsets = [8, 0], sizes = [24, 2], strides = [1, 1]} : vector<32x128xf32> to vector<24x2xf32>
    %cst_28 = arith.constant dense<0.000000e+00> : vector<8x2xf32>
    %99 = tpu.matmul %97, %98, %cst_28 {dimension_numbers = #tpu.dot_dimension_numbers<[1], [0], [0], [1], [0, 0, 1, 1], [], []>} : vector<8x24xf32>, vector<24x2xf32>, vector<8x2xf32> -> vector<8x2xf32>
    %100 = vector.extract_strided_slice %8 {offsets = [3, 0], sizes = [1, 2], strides = [1, 1]} : vector<32x128xf32> to vector<1x2xf32>
    %101 = vector.broadcast %100 : vector<1x2xf32> to vector<8x2xf32>
    %102 = arith.addf %99, %101 : vector<8x2xf32>
    %cst_29 = arith.constant 2.000000e+01 : f32
    %103 = vector.broadcast %cst_29 : f32 to vector<8x2xf32>
    %104 = arith.minimumf %102, %103 : vector<8x2xf32>
    %cst_30 = arith.constant 2.000000e+01 : f32
    %105 = vector.broadcast %cst_30 : f32 to vector<8x2xf32>
    %106 = arith.cmpf ogt, %102, %105 : vector<8x2xf32>
    %107 = math.exp %104 : vector<8x2xf32>
    %108 = math.log1p %107 : vector<8x2xf32>
    %109 = arith.select %106, %102, %108 : vector<8x2xi1>, vector<8x2xf32>
    %110 = vector.extract_strided_slice %8 {offsets = [4, 0], sizes = [1, 2], strides = [1, 1]} : vector<32x128xf32> to vector<1x2xf32>
    %111 = vector.extract_strided_slice %8 {offsets = [5, 0], sizes = [1, 2], strides = [1, 1]} : vector<32x128xf32> to vector<1x2xf32>
    %cst_31 = arith.constant dense<0.000000e+00> : vector<2xf32>
    %112 = vector.multi_reduction <add>, %109, %cst_31 [0] : vector<8x2xf32> to vector<2xf32>
    %113 = vector.shape_cast %112 : vector<2xf32> to vector<1x2xf32>
    %cst_32 = arith.constant 1.250000e-01 : f32
    %114 = vector.broadcast %cst_32 : f32 to vector<1x2xf32>
    %115 = arith.mulf %113, %114 : vector<1x2xf32>
    %116 = vector.broadcast %115 : vector<1x2xf32> to vector<8x2xf32>
    %117 = arith.subf %109, %116 : vector<8x2xf32>
    %118 = arith.mulf %117, %117 : vector<8x2xf32>
    %cst_33 = arith.constant dense<0.000000e+00> : vector<2xf32>
    %119 = vector.multi_reduction <add>, %118, %cst_33 [0] : vector<8x2xf32> to vector<2xf32>
    %120 = vector.shape_cast %119 : vector<2xf32> to vector<1x2xf32>
    %cst_34 = arith.constant 1.250000e-01 : f32
    %121 = vector.broadcast %cst_34 : f32 to vector<1x2xf32>
    %122 = arith.mulf %120, %121 : vector<1x2xf32>
    %cst_35 = arith.constant 9.99999974E-6 : f32
    %123 = vector.broadcast %cst_35 : f32 to vector<1x2xf32>
    %124 = arith.addf %122, %123 : vector<1x2xf32>
    %125 = math.rsqrt %124 : vector<1x2xf32>
    %126 = vector.broadcast %125 : vector<1x2xf32> to vector<8x2xf32>
    %127 = arith.mulf %117, %126 : vector<8x2xf32>
    %128 = vector.broadcast %110 : vector<1x2xf32> to vector<8x2xf32>
    %129 = arith.mulf %127, %128 : vector<8x2xf32>
    %130 = vector.broadcast %111 : vector<1x2xf32> to vector<8x2xf32>
    %131 = arith.addf %129, %130 : vector<8x2xf32>
    %cst_36 = arith.constant 2.000000e+01 : f32
    %132 = vector.broadcast %cst_36 : f32 to vector<8x2xf32>
    %133 = arith.minimumf %131, %132 : vector<8x2xf32>
    %cst_37 = arith.constant 2.000000e+01 : f32
    %134 = vector.broadcast %cst_37 : f32 to vector<8x2xf32>
    %135 = arith.cmpf ogt, %131, %134 : vector<8x2xf32>
    %136 = math.exp %133 : vector<8x2xf32>
    %137 = math.log1p %136 : vector<8x2xf32>
    %138 = arith.select %135, %131, %137 : vector<8x2xi1>, vector<8x2xf32>
    %c0_38 = arith.constant 0 : index
    %c0_39 = arith.constant 0 : index
    %c0_40 = arith.constant 0 : index
    %139 = vector.load %arg5[%c0_38, %c0_39, %c0_40] : memref<1x8x2xf32, #tpu.memory_space<vmem>>, vector<1x8x2xf32>
    %140 = vector.shape_cast %139 : vector<1x8x2xf32> to vector<8x2xf32>
    %141 = vector.shape_cast %138 : vector<8x2xf32> to vector<1x8x2xf32>
    tpu.vector_store %arg5[%c0_38, %c0_39, %c0_40], %141 {strides = array<i32>} : memref<1x8x2xf32, #tpu.memory_space<vmem>>, vector<1x8x2xf32>,
    return
  }
  func.func @transform_0(%arg0: i32) -> (i32, i32) {
    %c0_i32 = arith.constant 0 : i32
    %c0_i32_0 = arith.constant 0 : i32
    %c0_i32_1 = arith.constant 0 : i32
    return %c0_i32, %c0_i32_0 : i32, i32
  }
  func.func @transform_1(%arg0: i32) -> (i32, i32, i32) {
    %c0_i32 = arith.constant 0 : i32
    %c0_i32_0 = arith.constant 0 : i32
    %c0_i32_1 = arith.constant 0 : i32
    return %arg0, %c0_i32, %c0_i32_0 : i32, i32, i32
  }
  func.func @transform_2(%arg0: i32) -> (i32, i32, i32) {
    %c0_i32 = arith.constant 0 : i32
    %c0_i32_0 = arith.constant 0 : i32
    %c0_i32_1 = arith.constant 0 : i32
    return %arg0, %c0_i32, %c0_i32_0 : i32, i32, i32
  }
  func.func @transform_3(%arg0: i32) -> (i32, i32, i32) {
    %c0_i32 = arith.constant 0 : i32
    %c0_i32_0 = arith.constant 0 : i32
    %c0_i32_1 = arith.constant 0 : i32
    return %arg0, %c0_i32, %c0_i32_0 : i32, i32, i32
  }
  func.func @transform_4(%arg0: i32) -> (i32, i32, i32) {
    %c0_i32 = arith.constant 0 : i32
    %c0_i32_0 = arith.constant 0 : i32
    %c0_i32_1 = arith.constant 0 : i32
    return %arg0, %c0_i32, %c0_i32_0 : i32, i32, i32
  }
}

</mosaic_0001>

<llo_original>
// kernel: _agentnet_pallas.1
$region0: #{_agentnet_pallas.1}
  #allocation0 [shape = 'u32[]', space=smem, size = 0x4, offset = 0x4, fixed_abs, tag = 'smem constant byte address 0x4 - core index']
  #allocation1 [shape = 'u32[72,128]{1,0:T(1,128)}', space=vmem, size = 0x9000, scoped, tag = 'internal scratch']
  %s0 = inlined_call_operand.hbm [shape: f32[8,128], index: 0, kind: input, shape index: {}]
  %s1 = inlined_call_operand.hbm [shape: f32[2,8,128], index: 1, kind: input, shape index: {}]
  %s2 = inlined_call_operand.hbm [shape: f32[2,96,128], index: 2, kind: input, shape index: {}]
  %s3 = inlined_call_operand.hbm [shape: f32[2,32,128], index: 3, kind: input, shape index: {}]
  %s4 = inlined_call_operand.vmem [shape: f32[2,8,2], index: 4, kind: output, shape index: {}]
  %s5 = sld [smem:[#allocation0]]
  $region65: #{_agentnet_pallas.1} parent=0
    _
  %s7 = ssub.s32 1, %s5
  %s8 = scalar_select 0, %s7, %s5
  $region1: #{_agentnet_pallas.1} parent=0
    #allocation2 [shape = 'u8[4096]{0}', space=vmem, size = 0x1000, scoped, tag = 'input window, operand 0, single buffered']
    #allocation3 [shape = 's32[2]{0}', space=sflag, size = 0x8, scoped, tag = 'scoped memory for _agentnet_pallas.1']
    #allocation4 [shape = 'u8[8192]{0}', space=vmem, size = 0x2000, scoped, tag = 'input window, operand 1']
    #allocation5 [shape = 's32[2]{0}', space=sflag, size = 0x8, scoped, tag = 'scoped memory for _agentnet_pallas.1']
    #allocation6 [shape = 'u8[98304]{0}', space=vmem, size = 0x18000, scoped, tag = 'input window, operand 2']
    #allocation7 [shape = 'u8[32768]{0}', space=vmem, size = 0x8000, scoped, tag = 'input window, operand 3']
    #allocation8 [shape = 's32[2]{0}', space=sflag, size = 0x8, scoped, tag = 'scoped memory for _agentnet_pallas.1']
    %9 = vsyncpa [#allocation3], 0
    %10 = vsyncpa [#allocation5], 0
    %s11 = scalar_lea.sflag [#allocation5], 1
    %12 = vsyncpa %s11, 0
    %13 = vsyncpa [#allocation8], 0
    %s14 = scalar_lea.sflag [#allocation8], 1
    %15 = vsyncpa %s14, 0
    loop: start=0, step=1, limit=4
    $region2: #{_agentnet_pallas.1} parent=1 // loop_pre_header
      _
    $region3: #{_agentnet_pallas.1} parent=1 // loop_header
      %s17 = sphi 0, %s21
      %p18 = scmp.ge.s32.totalorder %s17, 4
      %s25 = sphi 0, %s25
      %s27 = sphi 0, %s25
      %s28 = sphi 0, %s27
      %s42 = sphi 0, %s28
      %s48 = sphi 0, %s50
      %s51 = sphi 0, %s48
      %s52 = sphi 0, %s51
      %s68 = sphi 0, %s52
      %s74 = sphi 0, %s76
      %s77 = sphi 0, %s74
      %s78 = sphi 0, %s77
      %s94 = sphi 0, %s78
      %s100 = sphi 0, %s102
      %s103 = sphi 0, %s100
      %s104 = sphi 0, %s103
      %s120 = sphi 0, %s104
      %s126 = sphi 0, %s128
      %s129 = sphi 0, %s126
      %s130 = sphi 0, %s129
      %s146 = sphi 0, %s130
    $region4: #{_agentnet_pallas.1} parent=1 // loop_header_branch
      %20 = sbr.rel (%p18) target = $region8
    $region5: #{_agentnet_pallas.1} parent=1 // loop_body
      %s22 = ssub.s32 %s17, 1
      %s23 = ssub.s32 %s17, 2
      %s24 = sadd.s32 %s17, 1
      %s26 = sadd.s32 %s25, 1
      %p29 = scmp.eq.s32.totalorder %s17, 1
      %p30 = scmp.ne.s32.totalorder %s25, %s27
      %p31 = scmp.eq.s32.totalorder %s17, 0
      %p32 = por %p30, %p31
      %p33 = scmp.ne.s32.totalorder %s25, %s27
      %p34 = scmp.eq.s32.totalorder %s22, 1
      %p35 = por %p33, %p34
      %p36 = scmp.ne.s32.totalorder %s27, %s28
      %p37 = scmp.eq.s32.totalorder %s22, 0
      %p38 = por %p36, %p37
      %p39 = scmp.ne.s32.totalorder %s27, %s28
      %p40 = scmp.eq.s32.totalorder %s23, 1
      %p41 = por %p39, %p40
      %p43 = scmp.ne.s32.totalorder %s28, %s42
      %p44 = scmp.eq.s32.totalorder %s23, 0
      %p45 = por %p43, %p44
      %s46 = ssub.s32 %s17, %s24
      %p47 = scmp.eq.s32.totalorder %s46, 0
      %s49 = sadd.s32 %s48, 1
      %s50 = scalar_select %p47, %s48, %s49
      %p53 = pneg %p47
      %p54 = scmp.eq.s32.totalorder %s17, 1
      %p55 = por %p53, %p54
      %p56 = scmp.ne.s32.totalorder %s48, %s51
      %p57 = scmp.eq.s32.totalorder %s17, 0
      %p58 = por %p56, %p57
      %p59 = scmp.ne.s32.totalorder %s48, %s51
      %p60 = scmp.eq.s32.totalorder %s22, 1
      %p61 = por %p59, %p60
      %p62 = scmp.ne.s32.totalorder %s51, %s52
      %p63 = scmp.eq.s32.totalorder %s22, 0
      %p64 = por %p62, %p63
      %p65 = scmp.ne.s32.totalorder %s51, %s52
      %p66 = scmp.eq.s32.totalorder %s23, 1
      %p67 = por %p65, %p66
      %p69 = scmp.ne.s32.totalorder %s52, %s68
      %p70 = scmp.eq.s32.totalorder %s23, 0
      %p71 = por %p69, %p70
      %s72 = ssub.s32 %s17, %s24
      %p73 = scmp.eq.s32.totalorder %s72, 0
      %s75 = sadd.s32 %s74, 1
      %s76 = scalar_select %p73, %s74, %s75
      %p79 = pneg %p73
      %p80 = scmp.eq.s32.totalorder %s17, 1
      %p81 = por %p79, %p80
      %p82 = scmp.ne.s32.totalorder %s74, %s77
      %p83 = scmp.eq.s32.totalorder %s17, 0
      %p84 = por %p82, %p83
      %p85 = scmp.ne.s32.totalorder %s74, %s77
      %p86 = scmp.eq.s32.totalorder %s22, 1
      %p87 = por %p85, %p86
      %p88 = scmp.ne.s32.totalorder %s77, %s78
      %p89 = scmp.eq.s32.totalorder %s22, 0
      %p90 = por %p88, %p89
      %p91 = scmp.ne.s32.totalorder %s77, %s78
      %p92 = scmp.eq.s32.totalorder %s23, 1
      %p93 = por %p91, %p92
      %p95 = scmp.ne.s32.totalorder %s78, %s94
      %p96 = scmp.eq.s32.totalorder %s23, 0
      %p97 = por %p95, %p96
      %s98 = ssub.s32 %s17, %s24
      %p99 = scmp.eq.s32.totalorder %s98, 0
      %s101 = sadd.s32 %s100, 1
      %s102 = scalar_select %p99, %s100, %s101
      %p105 = pneg %p99
      %p106 = scmp.eq.s32.totalorder %s17, 1
      %p107 = por %p105, %p106
      %p108 = scmp.ne.s32.totalorder %s100, %s103
      %p109 = scmp.eq.s32.totalorder %s17, 0
      %p110 = por %p108, %p109
      %p111 = scmp.ne.s32.totalorder %s100, %s103
      %p112 = scmp.eq.s32.totalorder %s22, 1
      %p113 = por %p111, %p112
      %p114 = scmp.ne.s32.totalorder %s103, %s104
      %p115 = scmp.eq.s32.totalorder %s22, 0
      %p116 = por %p114, %p115
      %p117 = scmp.ne.s32.totalorder %s103, %s104
      %p118 = scmp.eq.s32.totalorder %s23, 1
      %p119 = por %p117, %p118
      %p121 = scmp.ne.s32.totalorder %s104, %s120
      %p122 = scmp.eq.s32.totalorder %s23, 0
      %p123 = por %p121, %p122
      %s124 = ssub.s32 %s17, %s24
      %p125 = scmp.eq.s32.totalorder %s124, 0
      %s127 = sadd.s32 %s126, 1
      %s128 = scalar_select %p125, %s126, %s127
      %p131 = pneg %p125
      %p132 = scmp.eq.s32.totalorder %s17, 1
      %p133 = por %p131, %p132
      %p134 = scmp.ne.s32.totalorder %s126, %s129
      %p135 = scmp.eq.s32.totalorder %s17, 0
      %p136 = por %p134, %p135
      %p137 = scmp.ne.s32.totalorder %s126, %s129
      %p138 = scmp.eq.s32.totalorder %s22, 1
      %p139 = por %p137, %p138
      %p140 = scmp.ne.s32.totalorder %s129, %s130
      %p141 = scmp.eq.s32.totalorder %s22, 0
      %p142 = por %p140, %p141
      %p143 = scmp.ne.s32.totalorder %s129, %s130
      %p144 = scmp.eq.s32.totalorder %s23, 1
      %p145 = por %p143, %p144
      %p147 = scmp.ne.s32.totalorder %s130, %s146
      %p148 = scmp.eq.s32.totalorder %s23, 0
      %p149 = por %p147, %p148
      %p150 = scmp.le.s32.totalorder 1, %s17
      %p151 = scmp.lt.s32.totalorder %s17, 3
      %p152 = pnand %p150, %p151
      %p153 = pneg %p152
      // Predicated region
      $region9: #{_agentnet_pallas.1} parent=5 // pred_check
        _
      $region10: #{_agentnet_pallas.1} parent=5 // pred_check_branch
        %155 = sbr.rel (%p152) target = $region12
      $region11: #{_agentnet_pallas.1} parent=5 // pred_region
        %s156 = ssub.s32 %s17, 1
        // Predicated region
        $region13: #{_agentnet_pallas.1} parent=11 // pred_check
          %p157 = pneg %p38
        $region14: #{_agentnet_pallas.1} parent=11 // pred_check_branch
          %159 = sbr.rel (%p157) target = $region16
        $region15: #{_agentnet_pallas.1} parent=11 // pred_region
          %161 = vsyncadd [#allocation3], 0
          %s163 = sshll.u32 %s0, 4
          %s164 = int_to_ptr.hbm [resolvable:$true] %s163
          %s165 = sshll.u32 [#allocation2], 4
          %s166 = int_to_ptr.vmem [resolvable:$true] %s165
          %168 = dma.hbm_to_vmem [thread:$0]  %s164, 128, %s166, [#allocation3]
        $region16: #{_agentnet_pallas.1} parent=11 // pred_fallthru
          _
      $region12: #{_agentnet_pallas.1} parent=5 // pred_fallthru
        _
      %p169 = scmp.lt.s32.totalorder %s17, 2
      // Predicated region
      $region17: #{_agentnet_pallas.1} parent=5 // pred_check
        %p170 = pneg %p169
      $region18: #{_agentnet_pallas.1} parent=5 // pred_check_branch
        %172 = sbr.rel (%p170) target = $region20
      $region19: #{_agentnet_pallas.1} parent=5 // pred_region
        // Predicated region
        $region21: #{_agentnet_pallas.1} parent=19 // pred_check
          %p173 = pneg %p58
        $region22: #{_agentnet_pallas.1} parent=19 // pred_check_branch
          %175 = sbr.rel (%p173) target = $region24
        $region23: #{_agentnet_pallas.1} parent=19 // pred_region
          %s176 = sand.u32 %s17, 1
          %s177 = scalar_lea.sflag [#allocation5], %s176
          %s178 = sand.u32 %s48, 1
          %s179 = smul.addr %s178, 8
          %s180 = scalar_lea.vmem [#allocation4], %s179
          %182 = vsyncadd %s177, 0
          %s183 = smul.addr %s17, 8
          %s184 = scalar_lea.hbm %s1, %s183
          %s186 = sshll.u32 %s184, 4
          %s187 = int_to_ptr.hbm [resolvable:$true] %s186
          %s188 = sshll.u32 %s180, 4
          %s189 = int_to_ptr.vmem [resolvable:$true] %s188
          %191 = dma.hbm_to_vmem [thread:$0]  %s187, 128, %s189, %s177
        $region24: #{_agentnet_pallas.1} parent=19 // pred_fallthru
          _
        // Predicated region
        $region25: #{_agentnet_pallas.1} parent=19 // pred_check
          %p192 = pneg %p84
        $region26: #{_agentnet_pallas.1} parent=19 // pred_check_branch
          %194 = sbr.rel (%p192) target = $region28
        $region27: #{_agentnet_pallas.1} parent=19 // pred_region
          %s195 = sand.u32 %s17, 1
          %s196 = scalar_lea.sflag [#allocation5], %s195
          %s197 = sand.u32 %s74, 1
          %s198 = smul.addr %s197, 96
          %s199 = scalar_lea.vmem [#allocation6], %s198
          %201 = vsyncadd %s196, 0
          %s202 = smul.addr %s17, 12
          %s203 = smul.addr %s202, 8
          %s204 = scalar_lea.hbm %s2, %s203
          %s205 = sshll.u32 %s204, 4
          %s206 = int_to_ptr.hbm [resolvable:$true] %s205
          %s207 = sshll.u32 %s199, 4
          %s208 = int_to_ptr.vmem [resolvable:$true] %s207
          %213 = dma.hbm_to_vmem [thread:$0]  %s206, 1536, %s208, %s196, 128, 128, 8
        $region28: #{_agentnet_pallas.1} parent=19 // pred_fallthru
          _
        // Predicated region
        $region29: #{_agentnet_pallas.1} parent=19 // pred_check
          %p214 = pneg %p110
        $region30: #{_agentnet_pallas.1} parent=19 // pred_check_branch
          %216 = sbr.rel (%p214) target = $region32
        $region31: #{_agentnet_pallas.1} parent=19 // pred_region
          %s217 = sand.u32 %s100, 1
          %s218 = scalar_lea.sflag [#allocation8], %s217
          %s219 = sand.u32 %s100, 1
          %s220 = smul.addr %s219, 32
          %s221 = scalar_lea.vmem [#allocation7], %s220
          %223 = vsyncadd %s218, 0
          %s224 = smul.addr %s17, 4
          %s225 = smul.addr %s224, 8
          %s226 = scalar_lea.hbm %s3, %s225
          %s227 = sshll.u32 %s226, 4
          %s228 = int_to_ptr.hbm [resolvable:$true] %s227
          %s229 = sshll.u32 %s221, 4
          %s230 = int_to_ptr.vmem [resolvable:$true] %s229
          %235 = dma.hbm_to_vmem [thread:$0]  %s228, 512, %s230, %s218, 128, 128, 8
        $region32: #{_agentnet_pallas.1} parent=19 // pred_fallthru
          _
      $region20: #{_agentnet_pallas.1} parent=5 // pred_fallthru
        _
      %p236 = scmp.le.s32.totalorder 1, %s17
      %p237 = scmp.lt.s32.totalorder %s17, 3
      %p238 = pnand %p236, %p237
      %p239 = pneg %p238
      // Predicated region
      $region33: #{_agentnet_pallas.1} parent=5 // pred_check
        _
      $region34: #{_agentnet_pallas.1} parent=5 // pred_check_branch
        %241 = sbr.rel (%p238) target = $region36
      $region35: #{_agentnet_pallas.1} parent=5 // pred_region
        %s242 = ssub.s32 %s17, 1
        // Predicated region
        $region37: #{_agentnet_pallas.1} parent=35 // pred_check
          %p243 = pneg %p38
        $region38: #{_agentnet_pallas.1} parent=35 // pred_check_branch
          %245 = sbr.rel (%p243) target = $region40
        $region39: #{_agentnet_pallas.1} parent=35 // pred_region
          %247 = dma.done [#allocation3], 128
        $region40: #{_agentnet_pallas.1} parent=35 // pred_fallthru
          _
        %s248 = sand.u32 %s22, 1
        %s249 = scalar_lea.sflag [#allocation5], %s248
        %s250 = sand.u32 %s51, 1
        %s251 = smul.addr %s250, 8
        %s252 = scalar_lea.vmem [#allocation4], %s251
        // Predicated region
        $region41: #{_agentnet_pallas.1} parent=35 // pred_check
          %p253 = pneg %p64
        $region42: #{_agentnet_pallas.1} parent=35 // pred_check_branch
          %255 = sbr.rel (%p253) target = $region44
        $region43: #{_agentnet_pallas.1} parent=35 // pred_region
          %257 = dma.done %s249, 128
        $region44: #{_agentnet_pallas.1} parent=35 // pred_fallthru
          _
        %s258 = sand.u32 %s22, 1
        %s259 = scalar_lea.sflag [#allocation5], %s258
        %s260 = sand.u32 %s77, 1
        %s261 = smul.addr %s260, 96
        %s262 = scalar_lea.vmem [#allocation6], %s261
        // Predicated region
        $region45: #{_agentnet_pallas.1} parent=35 // pred_check
          %p263 = pneg %p90
        $region46: #{_agentnet_pallas.1} parent=35 // pred_check_branch
          %265 = sbr.rel (%p263) target = $region48
        $region47: #{_agentnet_pallas.1} parent=35 // pred_region
          %267 = dma.done %s259, 1536
        $region48: #{_agentnet_pallas.1} parent=35 // pred_fallthru
          _
        %s268 = sand.u32 %s103, 1
        %s269 = scalar_lea.sflag [#allocation8], %s268
        %s270 = sand.u32 %s103, 1
        %s271 = smul.addr %s270, 32
        %s272 = scalar_lea.vmem [#allocation7], %s271
        // Predicated region
        $region49: #{_agentnet_pallas.1} parent=35 // pred_check
          %p273 = pneg %p116
        $region50: #{_agentnet_pallas.1} parent=35 // pred_check_branch
          %275 = sbr.rel (%p273) target = $region52
        $region51: #{_agentnet_pallas.1} parent=35 // pred_region
          %277 = dma.done %s269, 512
        $region52: #{_agentnet_pallas.1} parent=35 // pred_fallthru
          _
        %p278 = pneg %p38
        %p279 = pneg %p35
        %s280 = sand.u32 %s22, 1
        %s281 = scalar_lea.sflag [#allocation5], %s280
        %s282 = sand.u32 %s51, 1
        %s283 = smul.addr %s282, 8
        %s284 = scalar_lea.vmem [#allocation4], %s283
        %p285 = pneg %p64
        %p286 = pneg %p61
        %s287 = sand.u32 %s22, 1
        %s288 = scalar_lea.sflag [#allocation5], %s287
        %s289 = sand.u32 %s77, 1
        %s290 = smul.addr %s289, 96
        %s291 = scalar_lea.vmem [#allocation6], %s290
        %p292 = pneg %p90
        %p293 = pneg %p87
        %s294 = sand.u32 %s103, 1
        %s295 = scalar_lea.sflag [#allocation8], %s294
        %s296 = sand.u32 %s103, 1
        %s297 = smul.addr %s296, 32
        %s298 = scalar_lea.vmem [#allocation7], %s297
        %p299 = pneg %p116
        %p300 = pneg %p113
        %p301 = pneg %p142
        %p302 = pneg %p139
        %p303 = scmp.lt.s32.totalorder %s22, 1
        %s304 = scalar_select %p303, %s22, 1
        %s305 = smul.addr %s304, 8
        %s306 = scalar_lea.vmem %s4, %s305
        %p307 = scmp.lt.s32.totalorder %s22, 1
        %s308 = scalar_select %p307, %s22, 1
        %s309 = smul.addr %s308, 8
        %s310 = scalar_lea.vmem %s4, %s309
        %v311 = vld [vmem:[#allocation2] sm:$0xff]
        %v312 = vld [vmem:[%s252] sm:$0xff]
        %v313 = vld [vmem:[%s262] sm:$0xff]
        %v314 = vld [vmem:[%s262 + $0x8] sm:$0xff]
        %v315 = vld [vmem:[%s262 + $0x10] sm:$0xff]
        %v316 = vld [vmem:[%s262 + $0x18] sm:$0xff]
        %v317 = vld [vmem:[%s262 + $0x20] sm:$0xff]
        %v318 = vld [vmem:[%s262 + $0x28] sm:$0xff]
        %v319 = vld [vmem:[%s262 + $0x30] sm:$0xff]
        %v320 = vld [vmem:[%s262 + $0x38] sm:$0xff]
        %v321 = vld [vmem:[%s262 + $0x40] sm:$0xff]
        %v322 = vld [vmem:[%s262 + $0x48] sm:$0xff]
        %v323 = vld [vmem:[%s262 + $0x50] sm:$0xff]
        %v324 = vld [vmem:[%s262 + $0x58] sm:$0xff]
        %v325 = vld [vmem:[%s272] sm:$0xff]
        %v326 = vld [vmem:[%s272 + $0x8] sm:$0xff]
        %v327 = vld [vmem:[%s272 + $0x10] sm:$0xff]
        %v328 = vld [vmem:[%s272 + $0x18] sm:$0xff]
        %330 = vset.pattern.permute.xlu0 0
        %331 = vperm.xlu0 %330, %v311
        %v332 = vpop.permute.xlu0 %331
        %v334 = vperm.slane %v312, 0
        %v335 = vmul.f32 %v332, %v334
        %336 = vset.pattern.permute.xlu0 1
        %337 = vperm.xlu0 %336, %v311
        %v338 = vpop.permute.xlu0 %337
        %v340 = vperm.slane %v312, 1
        %v341 = vmul.f32 %v338, %v340
        %v342 = vadd.f32 %v335, %v341
        %v343 = vperm.slane %v312, 2
        %v344 = vadd.f32 %v342, %v343
        %v345 = vmin.f32 %v344, 20.0
        %vm346 = vcmp.gt.f32.partialorder %v344, 20.0
        %v347 = vmul.f32 %v345, 1.442695
        %v348 = vpow.pop %v347
        %v349 = vadd.f32 %v348, 1.0
        %v350 = vlog2.pop %v349
        %v351 = vmul.f32 %v350, 0.6931472
        %v352 = vmul.f32 -0.5, %v348
        %v353 = vadd.f32 %v352, 1.0
        %v354 = vmul.f32 %v353, %v348
        %v355 = vand.u32 2147483647, %v348
        %vm356 = vcmp.lt.f32.partialorder %v355, 0.0004427343
        %v357 = vsel %vm356, %v354, %v351
        %v358 = vsel %vm346, %v344, %v357
        %vm359 = vcmask 785408
        %v360 = vsel %vm359, %v358, 0.0
        %v361 = vrot.slane %v360, 4
        %v362 = vadd.f32 %v360, %v361
        %v363 = vrot.slane %v362, 2
        %v364 = vadd.f32 %v362, %v363
        %v365 = vrot.slane %v364, 1
        %v366 = vadd.f32 %v364, %v365
        %v367 = vmul.f32 %v366, 0.125
        %v368 = vsub.f32 %v358, %v367
        %v369 = vmul.f32 %v368, %v368
        %v370 = vsel %vm359, %v369, 0.0
        %v371 = vrot.slane %v370, 4
        %v372 = vadd.f32 %v370, %v371
        %v373 = vrot.slane %v372, 2
        %v374 = vadd.f32 %v372, %v373
        %v375 = vrot.slane %v374, 1
        %v376 = vadd.f32 %v374, %v375
        %v377 = vmul.f32 %v376, 0.125
        %v378 = vadd.f32 %v377, 1e-05
        %v379 = vrsqrt.pop %v378
        %v380 = vmul.f32 %v379, %v378
        %v381 = vmul.f32 %v380, %v379
        %v382 = vmul.f32 0.5, %v381
        %v383 = vsub.f32 1.5, %v382
        %v384 = vmul.f32 %v379, %v383
        %vm385 = vweird.f32 %v378
        %vm386 = vweird.f32 %v379
        %vm387 = vmor %vm385, %vm386
        %v388 = vsel %vm387, %v379, %v384
        %v389 = vmul.f32 %v368, %v388
        %v390 = vperm.slane %v312, 3
        %v391 = vmul.f32 %v389, %v390
        %v392 = vperm.slane %v312, 4
        %v393 = vadd.f32 %v391, %v392
        %v394 = vmin.f32 %v393, 20.0
        %vm395 = vcmp.gt.f32.partialorder %v393, 20.0
        %v396 = vmul.f32 %v394, 1.442695
        %v397 = vpow.pop %v396
        %v398 = vadd.f32 %v397, 1.0
        %v399 = vlog2.pop %v398
        %v400 = vmul.f32 %v399, 0.6931472
        %v401 = vmul.f32 -0.5, %v397
        %v402 = vadd.f32 %v401, 1.0
        %v403 = vmul.f32 %v402, %v397
        %v404 = vand.u32 2147483647, %v397
        %vm405 = vcmp.lt.f32.partialorder %v404, 0.0004427343
        %v406 = vsel %vm405, %v403, %v400
        %v407 = vsel %vm395, %v393, %v406
        %v408 = vperm.slane %v325, 0
        %v410 = vsel %vm359, %v407, 0
        %412 = vmatpush.msra.mxu0 0.0
        %413 = vmatpush.msra.mxu0 0.0
        %414 = vmatpush.msra.mxu0 0.0
        %415 = vmatpush.msra.mxu0 0.0
        %416 = vmatpush.msra.mxu0 %v324
        %417 = vmatpush.msra.mxu0 %v323
        %418 = vmatpush.msra.mxu0 %v322
        %419 = vmatpush.msra.mxu0 %v321
        %420 = vmatpush.msra.mxu0 %v320
        %421 = vmatpush.msra.mxu0 %v319
        %422 = vmatpush.msra.mxu0 %v318
        %423 = vmatpush.msra.mxu0 %v317
        %424 = vmatpush.msra.mxu0 %v316
        %425 = vmatpush.msra.mxu0 %v315
        %426 = vmatpush.msra.mxu0 %v314
        %427 = vmatpush.msra.mxu0 %v313
        %428 = vmatmul.f32.gmra.mxu0 %v410
        %v429 = vpop.f32.mrf.mxu0
        %v430 = vadd.f32 %v408, %v429
        %431 = vdwg.mxu0
        %v432 = vmin.f32 %v430, 20.0
        %vm433 = vcmp.gt.f32.partialorder %v430, 20.0
        %v434 = vmul.f32 %v432, 1.442695
        %v435 = vpow.pop %v434
        %v436 = vadd.f32 %v435, 1.0
        %v437 = vlog2.pop %v436
        %v438 = vmul.f32 %v437, 0.6931472
        %v439 = vmul.f32 -0.5, %v435
        %v440 = vadd.f32 %v439, 1.0
        %v441 = vmul.f32 %v440, %v435
        %v442 = vand.u32 2147483647, %v435
        %vm443 = vcmp.lt.f32.partialorder %v442, 0.0004427343
        %v444 = vsel %vm443, %v441, %v438
        %v445 = vsel %vm433, %v430, %v444
        %vm446 = vcmask 195584
        %v447 = vsel %vm446, %v445, 0.0
        %v448 = vrot.slane %v447, 4
        %v449 = vadd.f32 %v447, %v448
        %v450 = vrot.slane %v449, 2
        %v451 = vadd.f32 %v449, %v450
        %v452 = vrot.slane %v451, 1
        %v453 = vadd.f32 %v451, %v452
        %v454 = vmul.f32 %v453, 0.125
        %v455 = vsub.f32 %v445, %v454
        %v456 = vmul.f32 %v455, %v455
        %v457 = vsel %vm446, %v456, 0.0
        %v458 = vrot.slane %v457, 4
        %v459 = vadd.f32 %v457, %v458
        %v460 = vrot.slane %v459, 2
        %v461 = vadd.f32 %v459, %v460
        %v462 = vrot.slane %v461, 1
        %v463 = vadd.f32 %v461, %v462
        %v464 = vmul.f32 %v463, 0.125
        %v465 = vadd.f32 %v464, 1e-05
        %v466 = vrsqrt.pop %v465
        %v467 = vmul.f32 %v466, %v465
        %v468 = vmul.f32 %v467, %v466
        %v469 = vmul.f32 0.5, %v468
        %v470 = vsub.f32 1.5, %v469
        %v471 = vmul.f32 %v466, %v470
        %vm472 = vweird.f32 %v465
        %vm473 = vweird.f32 %v466
        %vm474 = vmor %vm472, %vm473
        %v475 = vsel %vm474, %v466, %v471
        %v476 = vmul.f32 %v455, %v475
        %v477 = vperm.slane %v325, 1
        %v478 = vmul.f32 %v476, %v477
        %v479 = vperm.slane %v325, 2
        %v480 = vadd.f32 %v478, %v479
        %v481 = vmin.f32 %v480, 20.0
        %vm482 = vcmp.gt.f32.partialorder %v480, 20.0
        %v483 = vmul.f32 %v481, 1.442695
        %v484 = vpow.pop %v483
        %v485 = vadd.f32 %v484, 1.0
        %v486 = vlog2.pop %v485
        %v487 = vmul.f32 %v486, 0.6931472
        %v488 = vmul.f32 -0.5, %v484
        %v489 = vadd.f32 %v488, 1.0
        %v490 = vmul.f32 %v489, %v484
        %v491 = vand.u32 2147483647, %v484
        %vm492 = vcmp.lt.f32.partialorder %v491, 0.0004427343
        %v493 = vsel %vm492, %v490, %v487
        %v494 = vsel %vm482, %v480, %v493
        %v495 = vperm.slane %v325, 3
        %v497 = vsel %vm446, %v494, 0
        %499 = vmatpush.msra.mxu0 0.0
        %500 = vmatpush.msra.mxu0 0.0
        %501 = vmatpush.msra.mxu0 0.0
        %502 = vmatpush.msra.mxu0 0.0
        %503 = vmatpush.msra.mxu0 0.0
        %504 = vmatpush.msra.mxu0 0.0
        %505 = vmatpush.msra.mxu0 0.0
        %506 = vmatpush.msra.mxu0 0.0
        %507 = vmatpush.msra.mxu0 0.0
        %508 = vmatpush.msra.mxu0 0.0
        %509 = vmatpush.msra.mxu0 0.0
        %510 = vmatpush.msra.mxu0 0.0
        %511 = vmatpush.msra.mxu0 0.0
        %512 = vmatpush.msra.mxu0 %v328
        %513 = vmatpush.msra.mxu0 %v327
        %514 = vmatpush.msra.mxu0 %v326
        %515 = vmatmul.f32.gmra.mxu0 %v497
        %v516 = vpop.f32.mrf.mxu0
        %v517 = vadd.f32 %v495, %v516
        %518 = vdwg.mxu0
        %v519 = vmin.f32 %v517, 20.0
        %vm520 = vcmp.gt.f32.partialorder %v517, 20.0
        %v521 = vmul.f32 %v519, 1.442695
        %v522 = vpow.pop %v521
        %v523 = vadd.f32 %v522, 1.0
        %v524 = vlog2.pop %v523
        %v525 = vmul.f32 %v524, 0.6931472
        %v526 = vmul.f32 -0.5, %v522
        %v527 = vadd.f32 %v526, 1.0
        %v528 = vmul.f32 %v527, %v522
        %v529 = vand.u32 2147483647, %v522
        %vm530 = vcmp.lt.f32.partialorder %v529, 0.0004427343
        %v531 = vsel %vm530, %v528, %v525
        %v532 = vsel %vm520, %v517, %v531
        %vm533 = vcmask 15360
        %v534 = vsel %vm533, %v532, 0.0
        %v535 = vrot.slane %v534, 4
        %v536 = vadd.f32 %v534, %v535
        %v537 = vrot.slane %v536, 2
        %v538 = vadd.f32 %v536, %v537
        %v539 = vrot.slane %v538, 1
        %v540 = vadd.f32 %v538, %v539
        %v541 = vmul.f32 %v540, 0.125
        %v542 = vsub.f32 %v532, %v541
        %v543 = vmul.f32 %v542, %v542
        %v544 = vsel %vm533, %v543, 0.0
        %v545 = vrot.slane %v544, 4
        %v546 = vadd.f32 %v544, %v545
        %v547 = vrot.slane %v546, 2
        %v548 = vadd.f32 %v546, %v547
        %v549 = vrot.slane %v548, 1
        %v550 = vadd.f32 %v548, %v549
        %v551 = vmul.f32 %v550, 0.125
        %v552 = vadd.f32 %v551, 1e-05
        %v553 = vrsqrt.pop %v552
        %v554 = vmul.f32 %v553, %v552
        %v555 = vmul.f32 %v554, %v553
        %v556 = vmul.f32 0.5, %v555
        %v557 = vsub.f32 1.5, %v556
        %v558 = vmul.f32 %v553, %v557
        %vm559 = vweird.f32 %v552
        %vm560 = vweird.f32 %v553
        %vm561 = vmor %vm559, %vm560
        %v562 = vsel %vm561, %v553, %v558
        %v563 = vmul.f32 %v542, %v562
        %v564 = vperm.slane %v325, 4
        %v565 = vmul.f32 %v563, %v564
        %v566 = vperm.slane %v325, 5
        %v567 = vadd.f32 %v565, %v566
        %v568 = vmin.f32 %v567, 20.0
        %vm569 = vcmp.gt.f32.partialorder %v567, 20.0
        %v570 = vmul.f32 %v568, 1.442695
        %v571 = vpow.pop %v570
        %v572 = vadd.f32 %v571, 1.0
        %v573 = vlog2.pop %v572
        %v574 = vmul.f32 %v573, 0.6931472
        %v575 = vmul.f32 -0.5, %v571
        %v576 = vadd.f32 %v575, 1.0
        %v577 = vmul.f32 %v576, %v571
        %v578 = vand.u32 2147483647, %v571
        %vm579 = vcmp.lt.f32.partialorder %v578, 0.0004427343
        %v580 = vsel %vm579, %v577, %v574
        %v581 = vsel %vm569, %v567, %v580
        %582 = vst.msk [vmem:[%s310] sm:$0xff] %vm533, %v581
        %p583 = scmp.lt.s32.totalorder %s22, 1
        %s584 = scalar_select %p583, %s22, 1
        %s585 = smul.addr %s584, 8
        %s586 = scalar_lea.vmem %s4, %s585
        // Predicated region
        $region53: #{_agentnet_pallas.1} parent=35 // pred_check
          %p587 = pneg %p139
        $region54: #{_agentnet_pallas.1} parent=35 // pred_check_branch
          %589 = sbr.rel (%p587) target = $region56
        $region55: #{_agentnet_pallas.1} parent=35 // pred_region
          _
        $region56: #{_agentnet_pallas.1} parent=35 // pred_fallthru
          _
      $region36: #{_agentnet_pallas.1} parent=5 // pred_fallthru
        _
      %p590 = scmp.le.s32.totalorder 2, %s17
      // Predicated region
      $region57: #{_agentnet_pallas.1} parent=5 // pred_check
        %p591 = pneg %p590
      $region58: #{_agentnet_pallas.1} parent=5 // pred_check_branch
        %593 = sbr.rel (%p591) target = $region60
      $region59: #{_agentnet_pallas.1} parent=5 // pred_region
        %s594 = ssub.s32 %s17, 2
        // Predicated region
        $region61: #{_agentnet_pallas.1} parent=59 // pred_check
          %p595 = pneg %p145
        $region62: #{_agentnet_pallas.1} parent=59 // pred_check_branch
          %597 = sbr.rel (%p595) target = $region64
        $region63: #{_agentnet_pallas.1} parent=59 // pred_region
          %p598 = scmp.lt.s32.totalorder %s23, 1
          %s599 = scalar_select %p598, %s23, 1
          %s600 = smul.addr %s599, 8
          %s601 = scalar_lea.vmem %s4, %s600
        $region64: #{_agentnet_pallas.1} parent=59 // pred_fallthru
          _
      $region60: #{_agentnet_pallas.1} parent=5 // pred_fallthru
        _
    $region6: #{_agentnet_pallas.1} parent=1 // loop_footer
      %s21 = sadd.s32 1, %s17
    $region7: #{_agentnet_pallas.1} parent=1 // loop_footer_branch
      %16 = sbr.rel target = $region3
    $region8: #{_agentnet_pallas.1} parent=1 // loop_exit
      _
    %602 = vsyncpa [#allocation3], 1
    %s603 = scalar_lea.sflag [#allocation3], 1
    %604 = vsyncpa %s603, 1
    %605 = vsyncpa [#allocation5], 1
    %s606 = scalar_lea.sflag [#allocation5], 1
    %607 = vsyncpa %s606, 1
    %608 = vsyncpa [#allocation8], 1
    %s609 = scalar_lea.sflag [#allocation8], 1
    %610 = vsyncpa %s609, 1

</llo_original>
